<compile_context>
chip_gen: v5e
topology: v5e:2x2
jax: 0.10.0
libtpu: 0.0.40
codegen_flags: <defaults>
</compile_context>

<pallas_src>
import functools

import jax
import jax.numpy as jnp
from jax.experimental import pallas as pl
from jax.experimental.pallas import tpu as pltpu


def _round_up(x, m):
    return (x + m - 1) // m * m


def qnetwork_kernel(x_ref, w1_ref, b1_ref, w2_ref, b2_ref, o_ref):
    # Layer 1 on the MXU: (tile_b, in_dim) @ (in_dim, hidden), f32 accumulation.
    h = jnp.dot(x_ref[...], w1_ref[...], preferred_element_type=jnp.float32)
    # Bias + ReLU in f32 on the VPU (supported on all TPU generations).
    h = jnp.maximum(h + b1_ref[...], 0.0)
    # Layer 2: (tile_b, hidden) @ (hidden, out_dim). out_dim (=9) equals the full array
    # dim, so the narrow store is legal; its masked-vst cost is hidden (DMA-bound kernel).
    out = jnp.dot(h, w2_ref[...], preferred_element_type=jnp.float32)
    o_ref[...] = (out + b2_ref[...]).astype(o_ref.dtype)


def prepare_params(w1, b1, w2, b2):
    """One-time param prep, hoisted out of the forward path.

    Accepts PyTorch-style biases of shape (n,) or (1, n); returns f32 arrays with
    biases as (1, n) row vectors ready to be passed straight into the kernel.
    """
    return (jnp.asarray(w1, jnp.float32),
            jnp.asarray(b1, jnp.float32).reshape(1, -1),
            jnp.asarray(w2, jnp.float32),
            jnp.asarray(b2, jnp.float32).reshape(1, -1))


def _choose_tiling(batch, max_tile_b, min_tile_b=256):
    """Balanced batch tiles; >=2 grid steps when B is large enough (v7x megacore)."""
    b8 = _round_up(batch, 8)
    n_tiles = pl.cdiv(b8, max_tile_b)
    if b8 >= 2 * min_tile_b:
        n_tiles = max(n_tiles, 2)
    tile_b = _round_up(pl.cdiv(b8, n_tiles), 8)
    b_pad = _round_up(b8, tile_b)
    return tile_b, b_pad


@functools.partial(jax.jit, static_argnames=("max_tile_b",))
def qnetwork_forward(x, w1, b1, w2, b2, *, max_tile_b=16384):
    """x: (B, input_dim) f32; w*: (in, out) f32; b*: (1, out) f32 -> (B, output_dim) f32."""
    B, in_dim = x.shape
    hidden = w1.shape[1]
    out_dim = w2.shape[1]

    tile_b, b_pad = _choose_tiling(B, max_tile_b)
    grid = (b_pad // tile_b,)

    # Only pad the batch dim, and only when needed (no per-forward pass over weights).
    x_p = x if b_pad == B else jnp.pad(x, ((0, b_pad - B), (0, 0)))

    # VMEM footprint of one grid step (double-buffered x/out tiles, resident weights,
    # f32 hidden intermediate). Stays well under every generation's scoped VMEM.
    vmem_bytes = (
        2 * tile_b * in_dim * 4                       # x tiles (f32, double-buffered)
        + 2 * tile_b * out_dim * 4                    # out tiles (f32, double-buffered)
        + tile_b * hidden * 4                         # h intermediate (f32)
        + (in_dim * hidden + hidden * out_dim + hidden + out_dim) * 4   # resident params
    )
    vmem_limit = int(min(max(2 * vmem_bytes, 16 << 20), 48 << 20))

    cost = pl.CostEstimate(
        flops=2 * b_pad * (in_dim * hidden + hidden * out_dim),
        transcendentals=0,
        bytes_accessed=(b_pad * (in_dim + out_dim) * 4
                        + (in_dim * hidden + hidden * out_dim + hidden + out_dim) * 4),
    )

    out = pl.pallas_call(
        qnetwork_kernel,
        out_shape=jax.ShapeDtypeStruct((b_pad, out_dim), jnp.float32),
        grid=grid,
        in_specs=[
            pl.BlockSpec((tile_b, in_dim), lambda i: (i, 0)),    # x: tiled over batch
            pl.BlockSpec((in_dim, hidden), lambda i: (0, 0)),    # w1: resident in VMEM
            pl.BlockSpec((1, hidden), lambda i: (0, 0)),         # b1: resident
            pl.BlockSpec((hidden, out_dim), lambda i: (0, 0)),   # w2: resident (128x9)
            pl.BlockSpec((1, out_dim), lambda i: (0, 0)),        # b2: resident
        ],
        out_specs=pl.BlockSpec((tile_b, out_dim), lambda i: (i, 0)),
        compiler_params=pltpu.CompilerParams(
            dimension_semantics=("parallel",),
            vmem_limit_bytes=vmem_limit,
        ),
        cost_estimate=cost,
    )(x_p, w1, b1, w2, b2)

    return out if b_pad == B else out[:B]


def init_params(key, input_dim=8, hidden_dim=128, output_dim=9):
    """Deterministic init mimicking PyTorch nn.Linear (uniform +- 1/sqrt(fan_in)).

    Biases are returned with PyTorch-style shapes (n,); run prepare_params() once
    before calling qnetwork_forward.
    """
    k1, k2, k3, k4 = jax.random.split(key, 4)
    bound1 = 1.0 / jnp.sqrt(input_dim)
    bound2 = 1.0 / jnp.sqrt(hidden_dim)
    w1 = jax.random.uniform(k1, (input_dim, hidden_dim), jnp.float32, -bound1, bound1)
    b1 = jax.random.uniform(k2, (hidden_dim,), jnp.float32, -bound1, bound1)
    w2 = jax.random.uniform(k3, (hidden_dim, output_dim), jnp.float32, -bound2, bound2)
    b2 = jax.random.uniform(k4, (output_dim,), jnp.float32, -bound2, bound2)
    return w1, b1, w2, b2


if __name__ == "__main__":
    key = jax.random.PRNGKey(0)
    k_x, k_p = jax.random.split(key)

    batch, input_dim, hidden_dim, output_dim = 8, 8, 128, 9
    x = jax.random.normal(k_x, (batch, input_dim), jnp.float32)
    w1, b1, w2, b2 = init_params(k_p, input_dim, hidden_dim, output_dim)

    # One-time param prep (hoisted out of the forward / inference loop).
    params = prepare_params(w1, b1, w2, b2)

    out = qnetwork_forward(x, *params)
    out = jax.block_until_ready(out)

    # Reference check in plain f32 JAX.
    ref = jnp.maximum(x @ w1 + b1[None, :], 0.0) @ w2 + b2[None, :]
    assert out.shape == (batch, output_dim)
    assert jnp.allclose(out, ref, atol=5e-2, rtol=5e-2)

    print("KERNEL_OK")
</pallas_src>

<mosaic_0001>
module attributes {stable_mosaic.version = 11 : i64} {
  func.func @qnetwork_kernel(%arg0: i32, %arg1: memref<8x8xf32, #tpu.memory_space<vmem>>, %arg2: memref<8x128xf32, #tpu.memory_space<vmem>>, %arg3: memref<1x128xf32, #tpu.memory_space<vmem>>, %arg4: memref<128x9xf32, #tpu.memory_space<vmem>>, %arg5: memref<1x9xf32, #tpu.memory_space<vmem>>, %arg6: memref<8x9xf32, #tpu.memory_space<vmem>>) attributes {dimension_semantics = [#tpu.dimension_semantics<parallel>], iteration_bounds = array<i64: 1>, scalar_prefetch = 0 : i64, scratch_operands = 0 : i64, tpu.core_type = #tpu.core_type<tc>, window_params = [{transform_indices = @transform_0, window_bounds = array<i64: 8, 8>}, {pipeline_mode = #tpu.pipeline_mode<synchronous>, transform_indices = @transform_1, window_bounds = array<i64: 8, 128>}, {pipeline_mode = #tpu.pipeline_mode<synchronous>, transform_indices = @transform_2, window_bounds = array<i64: 1, 128>}, {pipeline_mode = #tpu.pipeline_mode<synchronous>, transform_indices = @transform_3, window_bounds = array<i64: 128, 9>}, {pipeline_mode = #tpu.pipeline_mode<synchronous>, transform_indices = @transform_4, window_bounds = array<i64: 1, 9>}, {transform_indices = @transform_5, window_bounds = array<i64: 8, 9>}]} {
    %c0 = arith.constant 0 : index
    %c0_0 = arith.constant 0 : index
    %0 = vector.load %arg1[%c0, %c0_0] : memref<8x8xf32, #tpu.memory_space<vmem>>, vector<8x8xf32>
    %c0_1 = arith.constant 0 : index
    %c0_2 = arith.constant 0 : index
    %1 = vector.load %arg2[%c0_1, %c0_2] : memref<8x128xf32, #tpu.memory_space<vmem>>, vector<8x128xf32>
    %cst = arith.constant dense<0.000000e+00> : vector<8x128xf32>
    %2 = tpu.matmul %0, %1, %cst {dimension_numbers = #tpu.dot_dimension_numbers<[1], [0], [0], [1], [0, 0, 1, 1], [], []>} : vector<8x8xf32>, vector<8x128xf32>, vector<8x128xf32> -> vector<8x128xf32>
    %c0_3 = arith.constant 0 : index
    %c0_4 = arith.constant 0 : index
    %3 = vector.load %arg3[%c0_3, %c0_4] : memref<1x128xf32, #tpu.memory_space<vmem>>, vector<1x128xf32>
    %4 = vector.broadcast %3 : vector<1x128xf32> to vector<8x128xf32>
    %5 = arith.addf %2, %4 : vector<8x128xf32>
    %cst_5 = arith.constant 0.000000e+00 : f32
    %6 = vector.broadcast %cst_5 : f32 to vector<8x128xf32>
    %7 = arith.maximumf %5, %6 : vector<8x128xf32>
    %c0_6 = arith.constant 0 : index
    %c0_7 = arith.constant 0 : index
    %8 = vector.load %arg4[%c0_6, %c0_7] : memref<128x9xf32, #tpu.memory_space<vmem>>, vector<128x9xf32>
    %cst_8 = arith.constant dense<0.000000e+00> : vector<8x9xf32>
    %9 = tpu.matmul %7, %8, %cst_8 {dimension_numbers = #tpu.dot_dimension_numbers<[1], [0], [0], [1], [0, 0, 1, 1], [], []>} : vector<8x128xf32>, vector<128x9xf32>, vector<8x9xf32> -> vector<8x9xf32>
    %c0_9 = arith.constant 0 : index
    %c0_10 = arith.constant 0 : index
    %10 = vector.load %arg5[%c0_9, %c0_10] : memref<1x9xf32, #tpu.memory_space<vmem>>, vector<1x9xf32>
    %11 = vector.broadcast %10 : vector<1x9xf32> to vector<8x9xf32>
    %12 = arith.addf %9, %11 : vector<8x9xf32>
    %c0_11 = arith.constant 0 : index
    %c0_12 = arith.constant 0 : index
    %13 = vector.load %arg6[%c0_11, %c0_12] : memref<8x9xf32, #tpu.memory_space<vmem>>, vector<8x9xf32>
    tpu.vector_store %arg6[%c0_11, %c0_12], %12 {strides = array<i32>} : memref<8x9xf32, #tpu.memory_space<vmem>>, vector<8x9xf32>,
    return
  }
  func.func @transform_0(%arg0: i32) -> (i32, i32) {
    %c0_i32 = arith.constant 0 : i32
    %c0_i32_0 = arith.constant 0 : i32
    return %arg0, %c0_i32 : i32, i32
  }
  func.func @transform_1(%arg0: i32) -> (i32, i32) {
    %c0_i32 = arith.constant 0 : i32
    %c0_i32_0 = arith.constant 0 : i32
    %c0_i32_1 = arith.constant 0 : i32
    return %c0_i32, %c0_i32_0 : i32, i32
  }
  func.func @transform_2(%arg0: i32) -> (i32, i32) {
    %c0_i32 = arith.constant 0 : i32
    %c0_i32_0 = arith.constant 0 : i32
    %c0_i32_1 = arith.constant 0 : i32
    return %c0_i32, %c0_i32_0 : i32, i32
  }
  func.func @transform_3(%arg0: i32) -> (i32, i32) {
    %c0_i32 = arith.constant 0 : i32
    %c0_i32_0 = arith.constant 0 : i32
    %c0_i32_1 = arith.constant 0 : i32
    return %c0_i32, %c0_i32_0 : i32, i32
  }
  func.func @transform_4(%arg0: i32) -> (i32, i32) {
    %c0_i32 = arith.constant 0 : i32
    %c0_i32_0 = arith.constant 0 : i32
    %c0_i32_1 = arith.constant 0 : i32
    return %c0_i32, %c0_i32_0 : i32, i32
  }
  func.func @transform_5(%arg0: i32) -> (i32, i32) {
    %c0_i32 = arith.constant 0 : i32
    %c0_i32_0 = arith.constant 0 : i32
    return %arg0, %c0_i32 : i32, i32
  }
}

</mosaic_0001>

<llo_original>
// kernel: qnetwork_forward.1
$region0: #{qnetwork_forward.1}
  #allocation0 [shape = 'u32[]', space=smem, size = 0x4, offset = 0x4, fixed_abs, tag = 'smem constant byte address 0x4 - core index']
  #allocation1 [shape = 'u32[72,128]{1,0:T(1,128)}', space=vmem, size = 0x9000, scoped, tag = 'internal scratch']
  %s0 = inlined_call_operand.vmem [shape: f32[8,8], index: 0, kind: input, shape index: {}]
  %s1 = inlined_call_operand.vmem [shape: f32[8,128], index: 1, kind: input, shape index: {}]
  %s2 = inlined_call_operand.vmem [shape: f32[1,128], index: 2, kind: input, shape index: {}]
  %s3 = inlined_call_operand.vmem [shape: f32[128,9], index: 3, kind: input, shape index: {}]
  %s4 = inlined_call_operand.vmem [shape: f32[1,9], index: 4, kind: input, shape index: {}]
  %s5 = inlined_call_operand.hbm [shape: f32[8,9], index: 5, kind: output, shape index: {}]
  %s6 = sld [smem:[#allocation0]]
  $region30: #{qnetwork_forward.1} parent=0
    _
  %s8 = ssub.s32 1, %s6
  %s9 = scalar_select 0, %s8, %s6
  $region1: #{qnetwork_forward.1} parent=0
    #allocation2 [shape = 'u8[4096]{0}', space=vmem, size = 0x1000, scoped, tag = 'output window, operand 0, single buffered']
    #allocation3 [shape = 's32[1]{0}', space=sflag, size = 0x4, scoped, tag = 'scoped memory for qnetwork_forward.1']
    %10 = vsyncpa [#allocation3], 0
    // Predicated region
    $region2: #{qnetwork_forward.1} parent=1 // pred_check
      _
    $region3: #{qnetwork_forward.1} parent=1 // pred_check_branch
      %12 = sbr.rel (0) target = $region5
    $region4: #{qnetwork_forward.1} parent=1 // pred_region
      _
    $region5: #{qnetwork_forward.1} parent=1 // pred_fallthru
      _
    // Predicated region
    $region6: #{qnetwork_forward.1} parent=1 // pred_check
      _
    $region7: #{qnetwork_forward.1} parent=1 // pred_check_branch
      %14 = sbr.rel (0) target = $region9
    $region8: #{qnetwork_forward.1} parent=1 // pred_region
      _
    $region9: #{qnetwork_forward.1} parent=1 // pred_fallthru
      _
    // Predicated region
    $region10: #{qnetwork_forward.1} parent=1 // pred_check
      _
    $region11: #{qnetwork_forward.1} parent=1 // pred_check_branch
      %16 = sbr.rel (0) target = $region13
    $region12: #{qnetwork_forward.1} parent=1 // pred_region
      _
    $region13: #{qnetwork_forward.1} parent=1 // pred_fallthru
      _
    // Predicated region
    $region14: #{qnetwork_forward.1} parent=1 // pred_check
      _
    $region15: #{qnetwork_forward.1} parent=1 // pred_check_branch
      %18 = sbr.rel (0) target = $region17
    $region16: #{qnetwork_forward.1} parent=1 // pred_region
      _
    $region17: #{qnetwork_forward.1} parent=1 // pred_fallthru
      _
    // Predicated region
    $region18: #{qnetwork_forward.1} parent=1 // pred_check
      _
    $region19: #{qnetwork_forward.1} parent=1 // pred_check_branch
      %20 = sbr.rel (0) target = $region21
    $region20: #{qnetwork_forward.1} parent=1 // pred_region
      _
    $region21: #{qnetwork_forward.1} parent=1 // pred_fallthru
      _
    %v21 = vld [vmem:[%s0] sm:$0xff]
    %v22 = vld [vmem:[%s1] sm:$0xff]
    %v23 = vld [vmem:[%s2] sm:$0x1]
    %v25 = vperm.slane %v23, 0
    %vm27 = vcmask 64512
    %v29 = vsel %vm27, %v21, 0
    %31 = vmatpush.msra.mxu0 0.0
    %32 = vmatpush.msra.mxu0 0.0
    %33 = vmatpush.msra.mxu0 0.0
    %34 = vmatpush.msra.mxu0 0.0
    %35 = vmatpush.msra.mxu0 0.0
    %36 = vmatpush.msra.mxu0 0.0
    %37 = vmatpush.msra.mxu0 0.0
    %38 = vmatpush.msra.mxu0 0.0
    %39 = vmatpush.msra.mxu0 0.0
    %40 = vmatpush.msra.mxu0 0.0
    %41 = vmatpush.msra.mxu0 0.0
    %42 = vmatpush.msra.mxu0 0.0
    %43 = vmatpush.msra.mxu0 0.0
    %44 = vmatpush.msra.mxu0 0.0
    %45 = vmatpush.msra.mxu0 0.0
    %46 = vmatpush.msra.mxu0 %v22
    %47 = vmatmul.f32.gmra.mxu0 %v29
    %v48 = vpop.f32.mrf.mxu0
    %v49 = vadd.f32 %v25, %v48
    %50 = vdwg.mxu0
    %v51 = vmax.f32 %v49, 0.0
    %v52 = vld [vmem:[%s3] sm:$0xff]
    %v53 = vld [vmem:[%s3 + $0x8] sm:$0xff]
    %v54 = vld [vmem:[%s3 + $0x10] sm:$0xff]
    %v55 = vld [vmem:[%s3 + $0x18] sm:$0xff]
    %v56 = vld [vmem:[%s3 + $0x20] sm:$0xff]
    %v57 = vld [vmem:[%s3 + $0x28] sm:$0xff]
    %v58 = vld [vmem:[%s3 + $0x30] sm:$0xff]
    %v59 = vld [vmem:[%s3 + $0x38] sm:$0xff]
    %v60 = vld [vmem:[%s3 + $0x40] sm:$0xff]
    %v61 = vld [vmem:[%s3 + $0x48] sm:$0xff]
    %v62 = vld [vmem:[%s3 + $0x50] sm:$0xff]
    %v63 = vld [vmem:[%s3 + $0x58] sm:$0xff]
    %v64 = vld [vmem:[%s3 + $0x60] sm:$0xff]
    %v65 = vld [vmem:[%s3 + $0x68] sm:$0xff]
    %v66 = vld [vmem:[%s3 + $0x70] sm:$0xff]
    %v67 = vld [vmem:[%s3 + $0x78] sm:$0xff]
    %v68 = vld [vmem:[%s4] sm:$0x1]
    %v70 = vperm.slane %v68, 0
    %72 = vmatpush.msra.mxu0 %v67
    %73 = vmatpush.msra.mxu0 %v66
    %74 = vmatpush.msra.mxu0 %v65
    %75 = vmatpush.msra.mxu0 %v64
    %76 = vmatpush.msra.mxu0 %v63
    %77 = vmatpush.msra.mxu0 %v62
    %78 = vmatpush.msra.mxu0 %v61
    %79 = vmatpush.msra.mxu0 %v60
    %80 = vmatpush.msra.mxu0 %v59
    %81 = vmatpush.msra.mxu0 %v58
    %82 = vmatpush.msra.mxu0 %v57
    %83 = vmatpush.msra.mxu0 %v56
    %84 = vmatpush.msra.mxu0 %v55
    %85 = vmatpush.msra.mxu0 %v54
    %86 = vmatpush.msra.mxu0 %v53
    %87 = vmatpush.msra.mxu0 %v52
    %88 = vmatmul.f32.gmra.mxu0 %v51
    %v89 = vpop.f32.mrf.mxu0
    %v90 = vadd.f32 %v70, %v89
    %91 = vdwg.mxu0
    %vm92 = vcmask 72704
    %93 = vst.msk [vmem:[#allocation2] sm:$0xff] %vm92, %v90
    // Predicated region
    $region22: #{qnetwork_forward.1} parent=1 // pred_check
      _
    $region23: #{qnetwork_forward.1} parent=1 // pred_check_branch
      %95 = sbr.rel (0) target = $region25
    $region24: #{qnetwork_forward.1} parent=1 // pred_region
      %97 = vsyncadd [#allocation3], 0
      %s99 = sshll.u32 [#allocation2], 4
      %s100 = int_to_ptr.vmem [resolvable:$true] %s99
      %s101 = sshll.u32 %s5, 4
      %s102 = int_to_ptr.hbm [resolvable:$true] %s101
      %104 = dma.vmem_to_hbm [thread:$0]  %s100, 128, %s102, [#allocation3]
    $region25: #{qnetwork_forward.1} parent=1 // pred_fallthru
      _
    // Predicated region
    $region26: #{qnetwork_forward.1} parent=1 // pred_check
      _
    $region27: #{qnetwork_forward.1} parent=1 // pred_check_branch
      %106 = sbr.rel (0) target = $region29
    $region28: #{qnetwork_forward.1} parent=1 // pred_region
      %108 = dma.done [#allocation3], 128
    $region29: #{qnetwork_forward.1} parent=1 // pred_fallthru
      _
    %109 = vsyncpa [#allocation3], 1

</llo_original>
